<compile_context>
chip_gen: v5e
topology: v5e:2x2
jax: 0.10.0
libtpu: 0.0.40
codegen_flags: <defaults>
</compile_context>

<pallas_src>
import functools
import math

import jax
import jax.numpy as jnp
import numpy as np
from jax import lax
from jax.experimental import pallas as pl
from jax.experimental.pallas import tpu as pltpu

NUM_BINS = 10
MIN_BIN_WIDTH = 1e-3
MIN_BIN_HEIGHT = 1e-3
MIN_DERIVATIVE = 1e-3
TAIL_BOUND = 5.0
# 33 f32 rows/element (~132 B/elem): 8192 lanes/step ~ 1.1 MiB, ~2.2 MiB with double
# buffering plus temporaries -- comfortably inside default scoped VMEM on v5e/v6e/v7x.
MAX_TILE = 8192

_HIGH = jax.lax.Precision.HIGHEST


def _round_up(x, m):
    return ((x + m - 1) // m) * m


# -----------------------------------------------------------------------------
# Pallas kernel: inverse rational-quadratic spline, elementwise over lanes.
# -----------------------------------------------------------------------------
def _rqs_inverse_kernel(x_ref, uw_ref, uh_ref, ud_ref, o_ref, *,
                        num_bins, left, right, bottom, top,
                        min_bin_width, min_bin_height, min_derivative):
    K = num_bins
    x = x_ref[...]        # (1,   T)
    uw = uw_ref[...]      # (K,   T)
    uh = uh_ref[...]      # (K,   T)
    ud = ud_ref[...]      # (K+1, T)

    def softmax_bins(z):
        # softmax along the (small) sublane / bin axis; one divide + K muls
        m = jnp.max(z, axis=0, keepdims=True)
        e = jnp.exp(z - m)
        return e * (1.0 / jnp.sum(e, axis=0, keepdims=True))

    w = min_bin_width + (1.0 - min_bin_width * K) * softmax_bins(uw)
    h = min_bin_height + (1.0 - min_bin_height * K) * softmax_bins(uh)
    # softplus written with plain log/exp (portable Mosaic lowering, numerically stable)
    d = min_derivative + jnp.maximum(ud, 0.0) + jnp.log(1.0 + jnp.exp(-jnp.abs(ud)))

    # Cumulative knot positions as K+1 lane-dense (1, T) rows.  Running sums are
    # unrolled exact f32 adds (K is tiny); endpoints are pinned exactly, mirroring
    # the reference's cumwidths[..., 0] = left / cumwidths[..., -1] = right.
    span_w = right - left
    span_h = top - bottom
    cumw = [None] * (K + 1)
    cumh = [None] * (K + 1)
    cumw[0] = jnp.full_like(x, left)
    cumh[0] = jnp.full_like(x, bottom)
    aw = jnp.zeros_like(x)
    ah = jnp.zeros_like(x)
    for k in range(K - 1):
        aw = aw + w[k:k + 1, :]
        ah = ah + h[k:k + 1, :]
        cumw[k + 1] = left + span_w * aw
        cumh[k + 1] = bottom + span_h * ah
    cumw[K] = jnp.full_like(x, right)
    cumh[K] = jnp.full_like(x, top)

    # searchsorted over cumheights (inverse direction), unrolled.  The k=0 knot is
    # exactly `bottom` (always <= in-domain x), so it cancels against the trailing -1
    # of the reference formulation and is skipped.
    acc = (x >= (top + 1e-6)).astype(jnp.int32)          # bumped last knot
    for k in range(1, K):
        acc = acc + (x >= cumh[k]).astype(jnp.int32)
    bin_idx = jnp.minimum(acc, K - 1)                    # (1, T) int32

    # fused select-gather: one compare per bin, shared by all six knot quantities
    zero = jnp.zeros_like(x)
    cw0 = zero
    cw1 = zero
    ch0 = zero
    ch1 = zero
    d0 = zero
    d1 = zero
    for k in range(K):
        m = bin_idx == k
        cw0 = jnp.where(m, cumw[k], cw0)
        cw1 = jnp.where(m, cumw[k + 1], cw1)
        ch0 = jnp.where(m, cumh[k], ch0)
        ch1 = jnp.where(m, cumh[k + 1], ch1)
        d0 = jnp.where(m, d[k:k + 1, :], d0)
        d1 = jnp.where(m, d[k + 1:k + 2, :], d1)

    ibw = cw1 - cw0                   # input_bin_widths
    ih = ch1 - ch0                    # input_heights
    idelta = ih / ibw                 # input_delta

    # inverse rational-quadratic solve (stable quadratic-formula root)
    dy = x - ch0
    dsum = d0 + d1 - 2.0 * idelta
    a = dy * dsum + ih * (idelta - d0)
    b = ih * d0 - dy * dsum
    c = -idelta * dy
    disc = jnp.maximum(b * b - 4.0 * a * c, 0.0)         # guards padded lanes only
    out = (2.0 * c) / (-b - jnp.sqrt(disc)) * ibw + cw0

    # linear tails: |x| > tail_bound passes through as identity
    inside = jnp.logical_and(x >= left, x <= right)
    o_ref[...] = jnp.where(inside, out, x)


# -----------------------------------------------------------------------------
# PRQTransform.forward wrapper around the Pallas kernel.
# -----------------------------------------------------------------------------
def prq_transform(inputs, unnormalized_widths, unnormalized_heights,
                  unnormalized_derivatives, *, tail_bound=TAIL_BOUND,
                  min_bin_width=MIN_BIN_WIDTH, min_bin_height=MIN_BIN_HEIGHT,
                  min_derivative=MIN_DERIVATIVE, max_tile=MAX_TILE):
    """PRQTransform.forward (inverse spline, linear tails), spline on TPU via Pallas.

    Mirrors the PyTorch module's `.squeeze()` plumbing and `.unsqueeze(0).unsqueeze(0)`
    on the way out."""
    assert max_tile % 128 == 0
    # boundary derivative logits = softplus^{-1}(1 - 1e-3), as in the PyTorch module
    constant = math.log(math.exp(1 - 0.001) - 1)
    ud = unnormalized_derivatives.at[..., 0].set(constant)
    ud = ud.at[..., -1].set(constant)

    x = jnp.squeeze(inputs)                      # torch .squeeze(): drop all 1-dims
    uw = jnp.squeeze(unnormalized_widths)
    uh = jnp.squeeze(unnormalized_heights)
    ud = jnp.squeeze(ud)

    base_shape = x.shape
    K = uw.shape[-1]
    N = int(np.prod(base_shape))
    assert uw.shape == base_shape + (K,)
    assert ud.shape == base_shape + (K + 1,)

    # wrapper-side layout plumbing (XLA): elements -> lanes, bins -> sublanes
    xf = x.reshape(1, N).astype(jnp.float32)
    uwf = jnp.transpose(uw.reshape(N, K)).astype(jnp.float32)
    uhf = jnp.transpose(uh.reshape(N, K)).astype(jnp.float32)
    udf = jnp.transpose(ud.reshape(N, K + 1)).astype(jnp.float32)

    n_tile = min(max_tile, _round_up(N, 128))
    n_pad = _round_up(N, n_tile)
    if n_pad != N:
        pad = ((0, 0), (0, n_pad - N))
        xf, uwf, uhf, udf = (jnp.pad(a, pad) for a in (xf, uwf, uhf, udf))

    kernel = functools.partial(
        _rqs_inverse_kernel, num_bins=K,
        left=-tail_bound, right=tail_bound, bottom=-tail_bound, top=tail_bound,
        min_bin_width=min_bin_width, min_bin_height=min_bin_height,
        min_derivative=min_derivative)

    out = pl.pallas_call(
        kernel,
        out_shape=jax.ShapeDtypeStruct((1, n_pad), jnp.float32),
        grid=(n_pad // n_tile,),
        in_specs=[
            pl.BlockSpec((1, n_tile), lambda i: (0, i)),        # x
            pl.BlockSpec((K, n_tile), lambda i: (0, i)),        # uw
            pl.BlockSpec((K, n_tile), lambda i: (0, i)),        # uh
            pl.BlockSpec((K + 1, n_tile), lambda i: (0, i)),    # ud
        ],
        out_specs=pl.BlockSpec((1, n_tile), lambda i: (0, i)),  # lane-dense output
        compiler_params=pltpu.CompilerParams(
            dimension_semantics=("parallel",)),
    )(xf, uwf, uhf, udf)

    o = out[0, :N].reshape(base_shape)
    return o[None, None]                         # mirrors o.unsqueeze(0).unsqueeze(0)


# -----------------------------------------------------------------------------
# Pure-JAX reference of the PyTorch rational_quadratic_spline (inverse direction).
# -----------------------------------------------------------------------------
def _rqs_reference(x, uw, uh, ud, *, left, right, bottom, top,
                   min_bin_width, min_bin_height, min_derivative):
    """Valid for in-domain inputs (as in the original module)."""
    K = uw.shape[-1]
    w = jax.nn.softmax(uw, axis=-1)
    w = min_bin_width + (1 - min_bin_width * K) * w
    cumw = jnp.cumsum(w, axis=-1)
    cumw = jnp.pad(cumw, [(0, 0)] * (cumw.ndim - 1) + [(1, 0)])
    cumw = (right - left) * cumw + left
    cumw = cumw.at[..., 0].set(left).at[..., -1].set(right)
    widths = cumw[..., 1:] - cumw[..., :-1]

    d = min_derivative + jax.nn.softplus(ud)

    h = jax.nn.softmax(uh, axis=-1)
    h = min_bin_height + (1 - min_bin_height * K) * h
    cumh = jnp.cumsum(h, axis=-1)
    cumh = jnp.pad(cumh, [(0, 0)] * (cumh.ndim - 1) + [(1, 0)])
    cumh = (top - bottom) * cumh + bottom
    cumh = cumh.at[..., 0].set(bottom).at[..., -1].set(top)
    heights = cumh[..., 1:] - cumh[..., :-1]

    bl = cumh.at[..., -1].add(1e-6)
    bin_idx = jnp.sum((x[..., None] >= bl).astype(jnp.int32), axis=-1) - 1

    def g(a):
        return jnp.take_along_axis(a, bin_idx[..., None], axis=-1)[..., 0]

    icw, ibw, ich, ih = g(cumw), g(widths), g(cumh), g(heights)
    idelta = g(heights / widths)
    d0, d1 = g(d), g(d[..., 1:])

    dy = x - ich
    dsum = d0 + d1 - 2 * idelta
    a = dy * dsum + ih * (idelta - d0)
    b = ih * d0 - dy * dsum
    c = -idelta * dy
    root = 2 * c / (-b - jnp.sqrt(b * b - 4 * a * c))
    return root * ibw + icw


def prq_transform_ref(inputs, unnormalized_widths, unnormalized_heights,
                      unnormalized_derivatives, *, tail_bound=TAIL_BOUND,
                      min_bin_width=MIN_BIN_WIDTH, min_bin_height=MIN_BIN_HEIGHT,
                      min_derivative=MIN_DERIVATIVE):
    constant = math.log(math.exp(1 - 0.001) - 1)
    ud = unnormalized_derivatives.at[..., 0].set(constant)
    ud = ud.at[..., -1].set(constant)
    x = jnp.squeeze(inputs)
    uw = jnp.squeeze(unnormalized_widths)
    uh = jnp.squeeze(unnormalized_heights)
    ud = jnp.squeeze(ud)
    o = _rqs_reference(x, uw, uh, ud, left=-tail_bound, right=tail_bound,
                       bottom=-tail_bound, top=tail_bound,
                       min_bin_width=min_bin_width, min_bin_height=min_bin_height,
                       min_derivative=min_derivative)
    return o[None, None]


# -----------------------------------------------------------------------------
# ConvFlow preamble (pre 1x1 -> DDSConv -> proj 1x1) and full forward.
# -----------------------------------------------------------------------------
def _transpose_like_module(x):
    # modules.Transpose: permute(0, 2, 1) for 3-D, .T otherwise
    if x.ndim == 3:
        return jnp.transpose(x, (0, 2, 1))
    return x.T


def _layer_norm_channels(x, gamma, beta, eps=1e-5):
    # modules.LayerNorm: normalize over the channel axis of (b, C, t)
    mu = jnp.mean(x, axis=1, keepdims=True)
    var = jnp.mean(jnp.square(x - mu), axis=1, keepdims=True)
    return (x - mu) / jnp.sqrt(var + eps) * gamma[None, :, None] + beta[None, :, None]


def _conv1x1(x, w, b):
    # torch Conv1d(kernel_size=1): w (C_out, C_in, 1), b (C_out,)
    y = jnp.einsum('oc,bct->bot', w[..., 0], x, precision=_HIGH)
    return y + b[None, :, None]


def _depthwise_conv1d(x, w, b, dilation):
    # torch Conv1d(C, C, k, groups=C, dilation=d, padding=(k*d - d)//2)
    k = w.shape[-1]
    pad = (k * dilation - dilation) // 2
    y = lax.conv_general_dilated(
        x, w, window_strides=(1,), padding=[(pad, pad)], rhs_dilation=(dilation,),
        dimension_numbers=('NCH', 'OIH', 'NCH'),
        feature_group_count=x.shape[1], precision=_HIGH)
    return y + b[None, :, None]


def _dds_conv(x, x_mask, layers, kernel_size):
    # modules.DDSConv (p_dropout=0 -> Dropout is a no-op; g=None; ReduceDims=identity)
    for i, lp in enumerate(layers):
        dilation = kernel_size ** i
        y = _depthwise_conv1d(x * x_mask, lp['sep_w'], lp['sep_b'], dilation)
        y = _layer_norm_channels(y, lp['gamma1'], lp['beta1'])
        y = jax.nn.gelu(y, approximate=False)            # exact erf-GELU, as F.gelu
        y = _conv1x1(y, lp['w1x1'], lp['b1x1'])
        y = _layer_norm_channels(y, lp['gamma2'], lp['beta2'])
        y = jax.nn.gelu(y, approximate=False)
        x = x + y
    return x * x_mask


def conv_flow_forward(params, x, x_mask, *, kernel_size, num_bins=NUM_BINS,
                      tail_bound=TAIL_BOUND, spline_fn=prq_transform):
    """ConvFlow.forward.  Like the PyTorch module's squeeze/unsqueeze plumbing, this
    requires batch == 1 and in_channels == 2 (half_channels == 1)."""
    half = params['pre_w'].shape[1]
    filter_channels = params['pre_w'].shape[0]
    x0, x1 = x[:, :half, :], x[:, half:, :]

    # TODO(synk): the tiny conv preamble (pre 1x1 -> DDSConv -> proj 1x1) is left as
    #             plain XLA ops; the Pallas kernel covers the data-dependent spline.
    h = _conv1x1(x0, params['pre_w'], params['pre_b'])
    h = _dds_conv(h, x_mask, params['layers'], kernel_size)
    h = _conv1x1(h, params['proj_w'], params['proj_b'])
    h = h * x_mask

    h = jnp.squeeze(h)                          # torch .squeeze()
    h = _transpose_like_module(h)
    h = h[None, None]                           # .unsqueeze(0).unsqueeze(0)
    scale = math.sqrt(filter_channels)
    uw = h[..., :num_bins] / scale
    uh = h[..., num_bins:2 * num_bins] / scale
    ud = h[..., 2 * num_bins:]
    ud = jnp.pad(ud, [(0, 0)] * (ud.ndim - 1) + [(1, 1)])   # F.pad(pad=(1, 1))

    x1 = spline_fn(x1, uw, uh, ud, tail_bound=tail_bound)   # Pallas spline (or ref)
    xc = jnp.concatenate([x0, x1], axis=1)
    return xc * jnp.broadcast_to(x_mask, xc.shape)


def init_conv_flow_params(key, *, in_channels, filter_channels, kernel_size,
                          n_layers, num_bins):
    half = in_channels // 2
    c_out = half * (num_bins * 3 - 1)
    keys = jax.random.split(key, 4 + 4 * n_layers)
    it = iter(keys)

    def rnd(shape, scale):
        return scale * jax.random.normal(next(it), shape, jnp.float32)

    params = {
        'pre_w': rnd((filter_channels, half, 1), 1.0 / math.sqrt(max(half, 1))),
        'pre_b': rnd((filter_channels,), 0.1),
        # NOTE: the PyTorch module zero-inits proj; small random weights are used here
        # so the test exercises the spline with non-degenerate, per-element bins.
        'proj_w': rnd((c_out, filter_channels, 1), 0.5),
        'proj_b': rnd((c_out,), 0.1),
        'layers': [],
    }
    for _ in range(n_layers):
        params['layers'].append({
            'sep_w': rnd((filter_channels, 1, kernel_size), 1.0 / math.sqrt(kernel_size)),
            'sep_b': rnd((filter_channels,), 0.1),
            'gamma1': jnp.ones((filter_channels,), jnp.float32),
            'beta1': jnp.zeros((filter_channels,), jnp.float32),
            'w1x1': rnd((filter_channels, filter_channels, 1),
                        1.0 / math.sqrt(filter_channels)),
            'b1x1': rnd((filter_channels,), 0.1),
            'gamma2': jnp.ones((filter_channels,), jnp.float32),
            'beta2': jnp.zeros((filter_channels,), jnp.float32),
        })
    return params


if __name__ == "__main__":
    root = jax.random.PRNGKey(0)
    k_par, k_x, k_spl = jax.random.split(root, 3)

    # ---- full ConvFlow forward (b=1, in_channels=2, as the module's plumbing needs)
    in_channels, filter_channels, kernel_size, n_layers = 2, 192, 3, 3
    num_bins, tail_bound = NUM_BINS, TAIL_BOUND
    b, t = 1, 96
    params = init_conv_flow_params(
        k_par, in_channels=in_channels, filter_channels=filter_channels,
        kernel_size=kernel_size, n_layers=n_layers, num_bins=num_bins)
    x = jax.random.uniform(k_x, (b, in_channels, t), jnp.float32,
                           minval=-4.0, maxval=4.0)
    x_mask = jnp.ones((b, 1, t), jnp.float32).at[:, :, t - 8:].set(0.0)

    out = conv_flow_forward(params, x, x_mask, kernel_size=kernel_size,
                            num_bins=num_bins, tail_bound=tail_bound,
                            spline_fn=prq_transform)
    out = jax.block_until_ready(out)
    assert out.shape == (b, in_channels, t), out.shape

    ref = conv_flow_forward(params, x, x_mask, kernel_size=kernel_size,
                            num_bins=num_bins, tail_bound=tail_bound,
                            spline_fn=prq_transform_ref)
    np.testing.assert_allclose(np.asarray(out), np.asarray(ref),
                               rtol=5e-5, atol=5e-5)

    # ---- standalone PRQ spline: multi-tile pipelined grid + default single tile ----
    kx, kw, kh, kd = jax.random.split(k_spl, 4)
    bb, tt = 2, 160
    inputs = jax.random.uniform(kx, (bb, 1, tt), jnp.float32, minval=-4.5, maxval=4.5)
    uw = jax.random.normal(kw, (bb, 1, tt, num_bins), jnp.float32)
    uh = jax.random.normal(kh, (bb, 1, tt, num_bins), jnp.float32)
    ud = jax.random.normal(kd, (bb, 1, tt, num_bins + 1), jnp.float32)

    o_small = jax.block_until_ready(prq_transform(inputs, uw, uh, ud, max_tile=128))
    o_big = jax.block_until_ready(prq_transform(inputs, uw, uh, ud))
    o_ref = prq_transform_ref(inputs, uw, uh, ud)
    assert o_small.shape == (1, 1, bb, tt), o_small.shape
    np.testing.assert_allclose(np.asarray(o_small), np.asarray(o_ref),
                               rtol=5e-5, atol=5e-5)
    np.testing.assert_allclose(np.asarray(o_big), np.asarray(o_ref),
                               rtol=5e-5, atol=5e-5)

    # linear tails: |x| > tail_bound passes through as identity
    x_tail = inputs.at[0, 0, :4].set(jnp.asarray([6.0, -7.5, 5.5, -9.0], jnp.float32))
    o_tail = jax.block_until_ready(prq_transform(x_tail, uw, uh, ud, max_tile=128))
    np.testing.assert_allclose(np.asarray(o_tail[0, 0, 0, :4]),
                               np.asarray(x_tail[0, 0, :4]), rtol=1e-6, atol=1e-6)

    print("KERNEL_OK")
</pallas_src>

<mosaic_0001>
module attributes {stable_mosaic.version = 11 : i64} {
  func.func @_rqs_inverse_kernel(%arg0: i32, %arg1: memref<1x128xf32, #tpu.memory_space<vmem>>, %arg2: memref<10x128xf32, #tpu.memory_space<vmem>>, %arg3: memref<10x128xf32, #tpu.memory_space<vmem>>, %arg4: memref<11x128xf32, #tpu.memory_space<vmem>>, %arg5: memref<1x128xf32, #tpu.memory_space<vmem>>) attributes {dimension_semantics = [#tpu.dimension_semantics<parallel>], iteration_bounds = array<i64: 1>, scalar_prefetch = 0 : i64, scratch_operands = 0 : i64, tpu.core_type = #tpu.core_type<tc>, window_params = [{transform_indices = @transform_0, window_bounds = array<i64: 1, 128>}, {transform_indices = @transform_1, window_bounds = array<i64: 10, 128>}, {transform_indices = @transform_2, window_bounds = array<i64: 10, 128>}, {transform_indices = @transform_3, window_bounds = array<i64: 11, 128>}, {transform_indices = @transform_4, window_bounds = array<i64: 1, 128>}]} {
    %c0 = arith.constant 0 : index
    %c0_0 = arith.constant 0 : index
    %0 = vector.load %arg1[%c0, %c0_0] : memref<1x128xf32, #tpu.memory_space<vmem>>, vector<1x128xf32>
    %c0_1 = arith.constant 0 : index
    %c0_2 = arith.constant 0 : index
    %1 = vector.load %arg2[%c0_1, %c0_2] : memref<10x128xf32, #tpu.memory_space<vmem>>, vector<10x128xf32>
    %c0_3 = arith.constant 0 : index
    %c0_4 = arith.constant 0 : index
    %2 = vector.load %arg3[%c0_3, %c0_4] : memref<10x128xf32, #tpu.memory_space<vmem>>, vector<10x128xf32>
    %c0_5 = arith.constant 0 : index
    %c0_6 = arith.constant 0 : index
    %3 = vector.load %arg4[%c0_5, %c0_6] : memref<11x128xf32, #tpu.memory_space<vmem>>, vector<11x128xf32>
    %cst = arith.constant dense<0xFF800000> : vector<128xf32>
    %4 = vector.multi_reduction <maximumf>, %1, %cst [0] : vector<10x128xf32> to vector<128xf32>
    %5 = vector.shape_cast %4 : vector<128xf32> to vector<1x128xf32>
    %6 = vector.broadcast %5 : vector<1x128xf32> to vector<10x128xf32>
    %7 = arith.subf %1, %6 : vector<10x128xf32>
    %8 = math.exp %7 : vector<10x128xf32>
    %cst_7 = arith.constant dense<0.000000e+00> : vector<128xf32>
    %9 = vector.multi_reduction <add>, %8, %cst_7 [0] : vector<10x128xf32> to vector<128xf32>
    %10 = vector.shape_cast %9 : vector<128xf32> to vector<1x128xf32>
    %cst_8 = arith.constant 1.000000e+00 : f32
    %11 = vector.broadcast %cst_8 : f32 to vector<1x128xf32>
    %12 = arith.divf %11, %10 : vector<1x128xf32>
    %13 = vector.broadcast %12 : vector<1x128xf32> to vector<10x128xf32>
    %14 = arith.mulf %8, %13 : vector<10x128xf32>
    %cst_9 = arith.constant 9.900000e-01 : f32
    %15 = vector.broadcast %cst_9 : f32 to vector<10x128xf32>
    %16 = arith.mulf %15, %14 : vector<10x128xf32>
    %cst_10 = arith.constant 1.000000e-03 : f32
    %17 = vector.broadcast %cst_10 : f32 to vector<10x128xf32>
    %18 = arith.addf %17, %16 : vector<10x128xf32>
    %cst_11 = arith.constant dense<0xFF800000> : vector<128xf32>
    %19 = vector.multi_reduction <maximumf>, %2, %cst_11 [0] : vector<10x128xf32> to vector<128xf32>
    %20 = vector.shape_cast %19 : vector<128xf32> to vector<1x128xf32>
    %21 = vector.broadcast %20 : vector<1x128xf32> to vector<10x128xf32>
    %22 = arith.subf %2, %21 : vector<10x128xf32>
    %23 = math.exp %22 : vector<10x128xf32>
    %cst_12 = arith.constant dense<0.000000e+00> : vector<128xf32>
    %24 = vector.multi_reduction <add>, %23, %cst_12 [0] : vector<10x128xf32> to vector<128xf32>
    %25 = vector.shape_cast %24 : vector<128xf32> to vector<1x128xf32>
    %cst_13 = arith.constant 1.000000e+00 : f32
    %26 = vector.broadcast %cst_13 : f32 to vector<1x128xf32>
    %27 = arith.divf %26, %25 : vector<1x128xf32>
    %28 = vector.broadcast %27 : vector<1x128xf32> to vector<10x128xf32>
    %29 = arith.mulf %23, %28 : vector<10x128xf32>
    %cst_14 = arith.constant 9.900000e-01 : f32
    %30 = vector.broadcast %cst_14 : f32 to vector<10x128xf32>
    %31 = arith.mulf %30, %29 : vector<10x128xf32>
    %cst_15 = arith.constant 1.000000e-03 : f32
    %32 = vector.broadcast %cst_15 : f32 to vector<10x128xf32>
    %33 = arith.addf %32, %31 : vector<10x128xf32>
    %cst_16 = arith.constant 0.000000e+00 : f32
    %34 = vector.broadcast %cst_16 : f32 to vector<11x128xf32>
    %35 = arith.maximumf %3, %34 : vector<11x128xf32>
    %cst_17 = arith.constant 1.000000e-03 : f32
    %36 = vector.broadcast %cst_17 : f32 to vector<11x128xf32>
    %37 = arith.addf %36, %35 : vector<11x128xf32>
    %38 = math.absf %3 : vector<11x128xf32>
    %cst_18 = arith.constant 0.000000e+00 : f32
    %39 = vector.broadcast %cst_18 : f32 to vector<11x128xf32>
    %40 = arith.subf %39, %38 : vector<11x128xf32>
    %41 = math.exp %40 : vector<11x128xf32>
    %cst_19 = arith.constant 1.000000e+00 : f32
    %42 = vector.broadcast %cst_19 : f32 to vector<11x128xf32>
    %43 = arith.addf %42, %41 : vector<11x128xf32>
    %44 = math.log %43 : vector<11x128xf32>
    %45 = arith.addf %37, %44 : vector<11x128xf32>
    %cst_20 = arith.constant -5.000000e+00 : f32
    %46 = vector.broadcast %cst_20 : f32 to vector<1x128xf32>
    %cst_21 = arith.constant -5.000000e+00 : f32
    %47 = vector.broadcast %cst_21 : f32 to vector<1x128xf32>
    %cst_22 = arith.constant 0.000000e+00 : f32
    %48 = vector.broadcast %cst_22 : f32 to vector<1x128xf32>
    %cst_23 = arith.constant 0.000000e+00 : f32
    %49 = vector.broadcast %cst_23 : f32 to vector<1x128xf32>
    %50 = vector.extract_strided_slice %18 {offsets = [0, 0], sizes = [1, 128], strides = [1, 1]} : vector<10x128xf32> to vector<1x128xf32>
    %51 = arith.addf %48, %50 : vector<1x128xf32>
    %52 = vector.extract_strided_slice %33 {offsets = [0, 0], sizes = [1, 128], strides = [1, 1]} : vector<10x128xf32> to vector<1x128xf32>
    %53 = arith.addf %49, %52 : vector<1x128xf32>
    %cst_24 = arith.constant 1.000000e+01 : f32
    %54 = vector.broadcast %cst_24 : f32 to vector<1x128xf32>
    %55 = arith.mulf %54, %51 : vector<1x128xf32>
    %cst_25 = arith.constant -5.000000e+00 : f32
    %56 = vector.broadcast %cst_25 : f32 to vector<1x128xf32>
    %57 = arith.addf %56, %55 : vector<1x128xf32>
    %cst_26 = arith.constant 1.000000e+01 : f32
    %58 = vector.broadcast %cst_26 : f32 to vector<1x128xf32>
    %59 = arith.mulf %58, %53 : vector<1x128xf32>
    %cst_27 = arith.constant -5.000000e+00 : f32
    %60 = vector.broadcast %cst_27 : f32 to vector<1x128xf32>
    %61 = arith.addf %60, %59 : vector<1x128xf32>
    %62 = vector.extract_strided_slice %18 {offsets = [1, 0], sizes = [1, 128], strides = [1, 1]} : vector<10x128xf32> to vector<1x128xf32>
    %63 = arith.addf %51, %62 : vector<1x128xf32>
    %64 = vector.extract_strided_slice %33 {offsets = [1, 0], sizes = [1, 128], strides = [1, 1]} : vector<10x128xf32> to vector<1x128xf32>
    %65 = arith.addf %53, %64 : vector<1x128xf32>
    %cst_28 = arith.constant 1.000000e+01 : f32
    %66 = vector.broadcast %cst_28 : f32 to vector<1x128xf32>
    %67 = arith.mulf %66, %63 : vector<1x128xf32>
    %cst_29 = arith.constant -5.000000e+00 : f32
    %68 = vector.broadcast %cst_29 : f32 to vector<1x128xf32>
    %69 = arith.addf %68, %67 : vector<1x128xf32>
    %cst_30 = arith.constant 1.000000e+01 : f32
    %70 = vector.broadcast %cst_30 : f32 to vector<1x128xf32>
    %71 = arith.mulf %70, %65 : vector<1x128xf32>
    %cst_31 = arith.constant -5.000000e+00 : f32
    %72 = vector.broadcast %cst_31 : f32 to vector<1x128xf32>
    %73 = arith.addf %72, %71 : vector<1x128xf32>
    %74 = vector.extract_strided_slice %18 {offsets = [2, 0], sizes = [1, 128], strides = [1, 1]} : vector<10x128xf32> to vector<1x128xf32>
    %75 = arith.addf %63, %74 : vector<1x128xf32>
    %76 = vector.extract_strided_slice %33 {offsets = [2, 0], sizes = [1, 128], strides = [1, 1]} : vector<10x128xf32> to vector<1x128xf32>
    %77 = arith.addf %65, %76 : vector<1x128xf32>
    %cst_32 = arith.constant 1.000000e+01 : f32
    %78 = vector.broadcast %cst_32 : f32 to vector<1x128xf32>
    %79 = arith.mulf %78, %75 : vector<1x128xf32>
    %cst_33 = arith.constant -5.000000e+00 : f32
    %80 = vector.broadcast %cst_33 : f32 to vector<1x128xf32>
    %81 = arith.addf %80, %79 : vector<1x128xf32>
    %cst_34 = arith.constant 1.000000e+01 : f32
    %82 = vector.broadcast %cst_34 : f32 to vector<1x128xf32>
    %83 = arith.mulf %82, %77 : vector<1x128xf32>
    %cst_35 = arith.constant -5.000000e+00 : f32
    %84 = vector.broadcast %cst_35 : f32 to vector<1x128xf32>
    %85 = arith.addf %84, %83 : vector<1x128xf32>
    %86 = vector.extract_strided_slice %18 {offsets = [3, 0], sizes = [1, 128], strides = [1, 1]} : vector<10x128xf32> to vector<1x128xf32>
    %87 = arith.addf %75, %86 : vector<1x128xf32>
    %88 = vector.extract_strided_slice %33 {offsets = [3, 0], sizes = [1, 128], strides = [1, 1]} : vector<10x128xf32> to vector<1x128xf32>
    %89 = arith.addf %77, %88 : vector<1x128xf32>
    %cst_36 = arith.constant 1.000000e+01 : f32
    %90 = vector.broadcast %cst_36 : f32 to vector<1x128xf32>
    %91 = arith.mulf %90, %87 : vector<1x128xf32>
    %cst_37 = arith.constant -5.000000e+00 : f32
    %92 = vector.broadcast %cst_37 : f32 to vector<1x128xf32>
    %93 = arith.addf %92, %91 : vector<1x128xf32>
    %cst_38 = arith.constant 1.000000e+01 : f32
    %94 = vector.broadcast %cst_38 : f32 to vector<1x128xf32>
    %95 = arith.mulf %94, %89 : vector<1x128xf32>
    %cst_39 = arith.constant -5.000000e+00 : f32
    %96 = vector.broadcast %cst_39 : f32 to vector<1x128xf32>
    %97 = arith.addf %96, %95 : vector<1x128xf32>
    %98 = vector.extract_strided_slice %18 {offsets = [4, 0], sizes = [1, 128], strides = [1, 1]} : vector<10x128xf32> to vector<1x128xf32>
    %99 = arith.addf %87, %98 : vector<1x128xf32>
    %100 = vector.extract_strided_slice %33 {offsets = [4, 0], sizes = [1, 128], strides = [1, 1]} : vector<10x128xf32> to vector<1x128xf32>
    %101 = arith.addf %89, %100 : vector<1x128xf32>
    %cst_40 = arith.constant 1.000000e+01 : f32
    %102 = vector.broadcast %cst_40 : f32 to vector<1x128xf32>
    %103 = arith.mulf %102, %99 : vector<1x128xf32>
    %cst_41 = arith.constant -5.000000e+00 : f32
    %104 = vector.broadcast %cst_41 : f32 to vector<1x128xf32>
    %105 = arith.addf %104, %103 : vector<1x128xf32>
    %cst_42 = arith.constant 1.000000e+01 : f32
    %106 = vector.broadcast %cst_42 : f32 to vector<1x128xf32>
    %107 = arith.mulf %106, %101 : vector<1x128xf32>
    %cst_43 = arith.constant -5.000000e+00 : f32
    %108 = vector.broadcast %cst_43 : f32 to vector<1x128xf32>
    %109 = arith.addf %108, %107 : vector<1x128xf32>
    %110 = vector.extract_strided_slice %18 {offsets = [5, 0], sizes = [1, 128], strides = [1, 1]} : vector<10x128xf32> to vector<1x128xf32>
    %111 = arith.addf %99, %110 : vector<1x128xf32>
    %112 = vector.extract_strided_slice %33 {offsets = [5, 0], sizes = [1, 128], strides = [1, 1]} : vector<10x128xf32> to vector<1x128xf32>
    %113 = arith.addf %101, %112 : vector<1x128xf32>
    %cst_44 = arith.constant 1.000000e+01 : f32
    %114 = vector.broadcast %cst_44 : f32 to vector<1x128xf32>
    %115 = arith.mulf %114, %111 : vector<1x128xf32>
    %cst_45 = arith.constant -5.000000e+00 : f32
    %116 = vector.broadcast %cst_45 : f32 to vector<1x128xf32>
    %117 = arith.addf %116, %115 : vector<1x128xf32>
    %cst_46 = arith.constant 1.000000e+01 : f32
    %118 = vector.broadcast %cst_46 : f32 to vector<1x128xf32>
    %119 = arith.mulf %118, %113 : vector<1x128xf32>
    %cst_47 = arith.constant -5.000000e+00 : f32
    %120 = vector.broadcast %cst_47 : f32 to vector<1x128xf32>
    %121 = arith.addf %120, %119 : vector<1x128xf32>
    %122 = vector.extract_strided_slice %18 {offsets = [6, 0], sizes = [1, 128], strides = [1, 1]} : vector<10x128xf32> to vector<1x128xf32>
    %123 = arith.addf %111, %122 : vector<1x128xf32>
    %124 = vector.extract_strided_slice %33 {offsets = [6, 0], sizes = [1, 128], strides = [1, 1]} : vector<10x128xf32> to vector<1x128xf32>
    %125 = arith.addf %113, %124 : vector<1x128xf32>
    %cst_48 = arith.constant 1.000000e+01 : f32
    %126 = vector.broadcast %cst_48 : f32 to vector<1x128xf32>
    %127 = arith.mulf %126, %123 : vector<1x128xf32>
    %cst_49 = arith.constant -5.000000e+00 : f32
    %128 = vector.broadcast %cst_49 : f32 to vector<1x128xf32>
    %129 = arith.addf %128, %127 : vector<1x128xf32>
    %cst_50 = arith.constant 1.000000e+01 : f32
    %130 = vector.broadcast %cst_50 : f32 to vector<1x128xf32>
    %131 = arith.mulf %130, %125 : vector<1x128xf32>
    %cst_51 = arith.constant -5.000000e+00 : f32
    %132 = vector.broadcast %cst_51 : f32 to vector<1x128xf32>
    %133 = arith.addf %132, %131 : vector<1x128xf32>
    %134 = vector.extract_strided_slice %18 {offsets = [7, 0], sizes = [1, 128], strides = [1, 1]} : vector<10x128xf32> to vector<1x128xf32>
    %135 = arith.addf %123, %134 : vector<1x128xf32>
    %136 = vector.extract_strided_slice %33 {offsets = [7, 0], sizes = [1, 128], strides = [1, 1]} : vector<10x128xf32> to vector<1x128xf32>
    %137 = arith.addf %125, %136 : vector<1x128xf32>
    %cst_52 = arith.constant 1.000000e+01 : f32
    %138 = vector.broadcast %cst_52 : f32 to vector<1x128xf32>
    %139 = arith.mulf %138, %135 : vector<1x128xf32>
    %cst_53 = arith.constant -5.000000e+00 : f32
    %140 = vector.broadcast %cst_53 : f32 to vector<1x128xf32>
    %141 = arith.addf %140, %139 : vector<1x128xf32>
    %cst_54 = arith.constant 1.000000e+01 : f32
    %142 = vector.broadcast %cst_54 : f32 to vector<1x128xf32>
    %143 = arith.mulf %142, %137 : vector<1x128xf32>
    %cst_55 = arith.constant -5.000000e+00 : f32
    %144 = vector.broadcast %cst_55 : f32 to vector<1x128xf32>
    %145 = arith.addf %144, %143 : vector<1x128xf32>
    %146 = vector.extract_strided_slice %18 {offsets = [8, 0], sizes = [1, 128], strides = [1, 1]} : vector<10x128xf32> to vector<1x128xf32>
    %147 = arith.addf %135, %146 : vector<1x128xf32>
    %148 = vector.extract_strided_slice %33 {offsets = [8, 0], sizes = [1, 128], strides = [1, 1]} : vector<10x128xf32> to vector<1x128xf32>
    %149 = arith.addf %137, %148 : vector<1x128xf32>
    %cst_56 = arith.constant 1.000000e+01 : f32
    %150 = vector.broadcast %cst_56 : f32 to vector<1x128xf32>
    %151 = arith.mulf %150, %147 : vector<1x128xf32>
    %cst_57 = arith.constant -5.000000e+00 : f32
    %152 = vector.broadcast %cst_57 : f32 to vector<1x128xf32>
    %153 = arith.addf %152, %151 : vector<1x128xf32>
    %cst_58 = arith.constant 1.000000e+01 : f32
    %154 = vector.broadcast %cst_58 : f32 to vector<1x128xf32>
    %155 = arith.mulf %154, %149 : vector<1x128xf32>
    %cst_59 = arith.constant -5.000000e+00 : f32
    %156 = vector.broadcast %cst_59 : f32 to vector<1x128xf32>
    %157 = arith.addf %156, %155 : vector<1x128xf32>
    %cst_60 = arith.constant 5.000000e+00 : f32
    %158 = vector.broadcast %cst_60 : f32 to vector<1x128xf32>
    %cst_61 = arith.constant 5.000000e+00 : f32
    %159 = vector.broadcast %cst_61 : f32 to vector<1x128xf32>
    %cst_62 = arith.constant 5.00000095 : f32
    %160 = vector.broadcast %cst_62 : f32 to vector<1x128xf32>
    %161 = arith.cmpf oge, %0, %160 : vector<1x128xf32>
    %162 = arith.extui %161 : vector<1x128xi1> to vector<1x128xi32>
    %163 = arith.cmpf oge, %0, %61 : vector<1x128xf32>
    %164 = arith.extui %163 : vector<1x128xi1> to vector<1x128xi32>
    %165 = arith.addi %162, %164 : vector<1x128xi32>
    %166 = arith.cmpf oge, %0, %73 : vector<1x128xf32>
    %167 = arith.extui %166 : vector<1x128xi1> to vector<1x128xi32>
    %168 = arith.addi %165, %167 : vector<1x128xi32>
    %169 = arith.cmpf oge, %0, %85 : vector<1x128xf32>
    %170 = arith.extui %169 : vector<1x128xi1> to vector<1x128xi32>
    %171 = arith.addi %168, %170 : vector<1x128xi32>
    %172 = arith.cmpf oge, %0, %97 : vector<1x128xf32>
    %173 = arith.extui %172 : vector<1x128xi1> to vector<1x128xi32>
    %174 = arith.addi %171, %173 : vector<1x128xi32>
    %175 = arith.cmpf oge, %0, %109 : vector<1x128xf32>
    %176 = arith.extui %175 : vector<1x128xi1> to vector<1x128xi32>
    %177 = arith.addi %174, %176 : vector<1x128xi32>
    %178 = arith.cmpf oge, %0, %121 : vector<1x128xf32>
    %179 = arith.extui %178 : vector<1x128xi1> to vector<1x128xi32>
    %180 = arith.addi %177, %179 : vector<1x128xi32>
    %181 = arith.cmpf oge, %0, %133 : vector<1x128xf32>
    %182 = arith.extui %181 : vector<1x128xi1> to vector<1x128xi32>
    %183 = arith.addi %180, %182 : vector<1x128xi32>
    %184 = arith.cmpf oge, %0, %145 : vector<1x128xf32>
    %185 = arith.extui %184 : vector<1x128xi1> to vector<1x128xi32>
    %186 = arith.addi %183, %185 : vector<1x128xi32>
    %187 = arith.cmpf oge, %0, %157 : vector<1x128xf32>
    %188 = arith.extui %187 : vector<1x128xi1> to vector<1x128xi32>
    %189 = arith.addi %186, %188 : vector<1x128xi32>
    %c9_i32 = arith.constant 9 : i32
    %190 = vector.broadcast %c9_i32 : i32 to vector<1x128xi32>
    %191 = arith.minsi %189, %190 : vector<1x128xi32>
    %cst_63 = arith.constant 0.000000e+00 : f32
    %192 = vector.broadcast %cst_63 : f32 to vector<1x128xf32>
    %c0_i32 = arith.constant 0 : i32
    %193 = vector.broadcast %c0_i32 : i32 to vector<1x128xi32>
    %194 = arith.cmpi eq, %191, %193 : vector<1x128xi32>
    %195 = arith.select %194, %46, %192 : vector<1x128xi1>, vector<1x128xf32>
    %196 = arith.select %194, %57, %192 : vector<1x128xi1>, vector<1x128xf32>
    %197 = arith.select %194, %47, %192 : vector<1x128xi1>, vector<1x128xf32>
    %198 = arith.select %194, %61, %192 : vector<1x128xi1>, vector<1x128xf32>
    %199 = vector.extract_strided_slice %45 {offsets = [0, 0], sizes = [1, 128], strides = [1, 1]} : vector<11x128xf32> to vector<1x128xf32>
    %200 = arith.select %194, %199, %192 : vector<1x128xi1>, vector<1x128xf32>
    %201 = vector.extract_strided_slice %45 {offsets = [1, 0], sizes = [1, 128], strides = [1, 1]} : vector<11x128xf32> to vector<1x128xf32>
    %202 = arith.select %194, %201, %192 : vector<1x128xi1>, vector<1x128xf32>
    %c1_i32 = arith.constant 1 : i32
    %203 = vector.broadcast %c1_i32 : i32 to vector<1x128xi32>
    %204 = arith.cmpi eq, %191, %203 : vector<1x128xi32>
    %205 = arith.select %204, %57, %195 : vector<1x128xi1>, vector<1x128xf32>
    %206 = arith.select %204, %69, %196 : vector<1x128xi1>, vector<1x128xf32>
    %207 = arith.select %204, %61, %197 : vector<1x128xi1>, vector<1x128xf32>
    %208 = arith.select %204, %73, %198 : vector<1x128xi1>, vector<1x128xf32>
    %209 = vector.extract_strided_slice %45 {offsets = [1, 0], sizes = [1, 128], strides = [1, 1]} : vector<11x128xf32> to vector<1x128xf32>
    %210 = arith.select %204, %209, %200 : vector<1x128xi1>, vector<1x128xf32>
    %211 = vector.extract_strided_slice %45 {offsets = [2, 0], sizes = [1, 128], strides = [1, 1]} : vector<11x128xf32> to vector<1x128xf32>
    %212 = arith.select %204, %211, %202 : vector<1x128xi1>, vector<1x128xf32>
    %c2_i32 = arith.constant 2 : i32
    %213 = vector.broadcast %c2_i32 : i32 to vector<1x128xi32>
    %214 = arith.cmpi eq, %191, %213 : vector<1x128xi32>
    %215 = arith.select %214, %69, %205 : vector<1x128xi1>, vector<1x128xf32>
    %216 = arith.select %214, %81, %206 : vector<1x128xi1>, vector<1x128xf32>
    %217 = arith.select %214, %73, %207 : vector<1x128xi1>, vector<1x128xf32>
    %218 = arith.select %214, %85, %208 : vector<1x128xi1>, vector<1x128xf32>
    %219 = vector.extract_strided_slice %45 {offsets = [2, 0], sizes = [1, 128], strides = [1, 1]} : vector<11x128xf32> to vector<1x128xf32>
    %220 = arith.select %214, %219, %210 : vector<1x128xi1>, vector<1x128xf32>
    %221 = vector.extract_strided_slice %45 {offsets = [3, 0], sizes = [1, 128], strides = [1, 1]} : vector<11x128xf32> to vector<1x128xf32>
    %222 = arith.select %214, %221, %212 : vector<1x128xi1>, vector<1x128xf32>
    %c3_i32 = arith.constant 3 : i32
    %223 = vector.broadcast %c3_i32 : i32 to vector<1x128xi32>
    %224 = arith.cmpi eq, %191, %223 : vector<1x128xi32>
    %225 = arith.select %224, %81, %215 : vector<1x128xi1>, vector<1x128xf32>
    %226 = arith.select %224, %93, %216 : vector<1x128xi1>, vector<1x128xf32>
    %227 = arith.select %224, %85, %217 : vector<1x128xi1>, vector<1x128xf32>
    %228 = arith.select %224, %97, %218 : vector<1x128xi1>, vector<1x128xf32>
    %229 = vector.extract_strided_slice %45 {offsets = [3, 0], sizes = [1, 128], strides = [1, 1]} : vector<11x128xf32> to vector<1x128xf32>
    %230 = arith.select %224, %229, %220 : vector<1x128xi1>, vector<1x128xf32>
    %231 = vector.extract_strided_slice %45 {offsets = [4, 0], sizes = [1, 128], strides = [1, 1]} : vector<11x128xf32> to vector<1x128xf32>
    %232 = arith.select %224, %231, %222 : vector<1x128xi1>, vector<1x128xf32>
    %c4_i32 = arith.constant 4 : i32
    %233 = vector.broadcast %c4_i32 : i32 to vector<1x128xi32>
    %234 = arith.cmpi eq, %191, %233 : vector<1x128xi32>
    %235 = arith.select %234, %93, %225 : vector<1x128xi1>, vector<1x128xf32>
    %236 = arith.select %234, %105, %226 : vector<1x128xi1>, vector<1x128xf32>
    %237 = arith.select %234, %97, %227 : vector<1x128xi1>, vector<1x128xf32>
    %238 = arith.select %234, %109, %228 : vector<1x128xi1>, vector<1x128xf32>
    %239 = vector.extract_strided_slice %45 {offsets = [4, 0], sizes = [1, 128], strides = [1, 1]} : vector<11x128xf32> to vector<1x128xf32>
    %240 = arith.select %234, %239, %230 : vector<1x128xi1>, vector<1x128xf32>
    %241 = vector.extract_strided_slice %45 {offsets = [5, 0], sizes = [1, 128], strides = [1, 1]} : vector<11x128xf32> to vector<1x128xf32>
    %242 = arith.select %234, %241, %232 : vector<1x128xi1>, vector<1x128xf32>
    %c5_i32 = arith.constant 5 : i32
    %243 = vector.broadcast %c5_i32 : i32 to vector<1x128xi32>
    %244 = arith.cmpi eq, %191, %243 : vector<1x128xi32>
    %245 = arith.select %244, %105, %235 : vector<1x128xi1>, vector<1x128xf32>
    %246 = arith.select %244, %117, %236 : vector<1x128xi1>, vector<1x128xf32>
    %247 = arith.select %244, %109, %237 : vector<1x128xi1>, vector<1x128xf32>
    %248 = arith.select %244, %121, %238 : vector<1x128xi1>, vector<1x128xf32>
    %249 = vector.extract_strided_slice %45 {offsets = [5, 0], sizes = [1, 128], strides = [1, 1]} : vector<11x128xf32> to vector<1x128xf32>
    %250 = arith.select %244, %249, %240 : vector<1x128xi1>, vector<1x128xf32>
    %251 = vector.extract_strided_slice %45 {offsets = [6, 0], sizes = [1, 128], strides = [1, 1]} : vector<11x128xf32> to vector<1x128xf32>
    %252 = arith.select %244, %251, %242 : vector<1x128xi1>, vector<1x128xf32>
    %c6_i32 = arith.constant 6 : i32
    %253 = vector.broadcast %c6_i32 : i32 to vector<1x128xi32>
    %254 = arith.cmpi eq, %191, %253 : vector<1x128xi32>
    %255 = arith.select %254, %117, %245 : vector<1x128xi1>, vector<1x128xf32>
    %256 = arith.select %254, %129, %246 : vector<1x128xi1>, vector<1x128xf32>
    %257 = arith.select %254, %121, %247 : vector<1x128xi1>, vector<1x128xf32>
    %258 = arith.select %254, %133, %248 : vector<1x128xi1>, vector<1x128xf32>
    %259 = vector.extract_strided_slice %45 {offsets = [6, 0], sizes = [1, 128], strides = [1, 1]} : vector<11x128xf32> to vector<1x128xf32>
    %260 = arith.select %254, %259, %250 : vector<1x128xi1>, vector<1x128xf32>
    %261 = vector.extract_strided_slice %45 {offsets = [7, 0], sizes = [1, 128], strides = [1, 1]} : vector<11x128xf32> to vector<1x128xf32>
    %262 = arith.select %254, %261, %252 : vector<1x128xi1>, vector<1x128xf32>
    %c7_i32 = arith.constant 7 : i32
    %263 = vector.broadcast %c7_i32 : i32 to vector<1x128xi32>
    %264 = arith.cmpi eq, %191, %263 : vector<1x128xi32>
    %265 = arith.select %264, %129, %255 : vector<1x128xi1>, vector<1x128xf32>
    %266 = arith.select %264, %141, %256 : vector<1x128xi1>, vector<1x128xf32>
    %267 = arith.select %264, %133, %257 : vector<1x128xi1>, vector<1x128xf32>
    %268 = arith.select %264, %145, %258 : vector<1x128xi1>, vector<1x128xf32>
    %269 = vector.extract_strided_slice %45 {offsets = [7, 0], sizes = [1, 128], strides = [1, 1]} : vector<11x128xf32> to vector<1x128xf32>
    %270 = arith.select %264, %269, %260 : vector<1x128xi1>, vector<1x128xf32>
    %271 = vector.extract_strided_slice %45 {offsets = [8, 0], sizes = [1, 128], strides = [1, 1]} : vector<11x128xf32> to vector<1x128xf32>
    %272 = arith.select %264, %271, %262 : vector<1x128xi1>, vector<1x128xf32>
    %c8_i32 = arith.constant 8 : i32
    %273 = vector.broadcast %c8_i32 : i32 to vector<1x128xi32>
    %274 = arith.cmpi eq, %191, %273 : vector<1x128xi32>
    %275 = arith.select %274, %141, %265 : vector<1x128xi1>, vector<1x128xf32>
    %276 = arith.select %274, %153, %266 : vector<1x128xi1>, vector<1x128xf32>
    %277 = arith.select %274, %145, %267 : vector<1x128xi1>, vector<1x128xf32>
    %278 = arith.select %274, %157, %268 : vector<1x128xi1>, vector<1x128xf32>
    %279 = vector.extract_strided_slice %45 {offsets = [8, 0], sizes = [1, 128], strides = [1, 1]} : vector<11x128xf32> to vector<1x128xf32>
    %280 = arith.select %274, %279, %270 : vector<1x128xi1>, vector<1x128xf32>
    %281 = vector.extract_strided_slice %45 {offsets = [9, 0], sizes = [1, 128], strides = [1, 1]} : vector<11x128xf32> to vector<1x128xf32>
    %282 = arith.select %274, %281, %272 : vector<1x128xi1>, vector<1x128xf32>
    %c9_i32_64 = arith.constant 9 : i32
    %283 = vector.broadcast %c9_i32_64 : i32 to vector<1x128xi32>
    %284 = arith.cmpi eq, %191, %283 : vector<1x128xi32>
    %285 = arith.select %284, %153, %275 : vector<1x128xi1>, vector<1x128xf32>
    %286 = arith.select %284, %158, %276 : vector<1x128xi1>, vector<1x128xf32>
    %287 = arith.select %284, %157, %277 : vector<1x128xi1>, vector<1x128xf32>
    %288 = arith.select %284, %159, %278 : vector<1x128xi1>, vector<1x128xf32>
    %289 = vector.extract_strided_slice %45 {offsets = [9, 0], sizes = [1, 128], strides = [1, 1]} : vector<11x128xf32> to vector<1x128xf32>
    %290 = arith.select %284, %289, %280 : vector<1x128xi1>, vector<1x128xf32>
    %291 = vector.extract_strided_slice %45 {offsets = [10, 0], sizes = [1, 128], strides = [1, 1]} : vector<11x128xf32> to vector<1x128xf32>
    %292 = arith.select %284, %291, %282 : vector<1x128xi1>, vector<1x128xf32>
    %293 = arith.subf %286, %285 : vector<1x128xf32>
    %294 = arith.subf %288, %287 : vector<1x128xf32>
    %295 = arith.divf %294, %293 : vector<1x128xf32>
    %296 = arith.subf %0, %287 : vector<1x128xf32>
    %297 = arith.addf %290, %292 : vector<1x128xf32>
    %cst_65 = arith.constant 2.000000e+00 : f32
    %298 = vector.broadcast %cst_65 : f32 to vector<1x128xf32>
    %299 = arith.mulf %298, %295 : vector<1x128xf32>
    %300 = arith.subf %297, %299 : vector<1x128xf32>
    %301 = arith.mulf %296, %300 : vector<1x128xf32>
    %302 = arith.subf %295, %290 : vector<1x128xf32>
    %303 = arith.mulf %294, %302 : vector<1x128xf32>
    %304 = arith.addf %301, %303 : vector<1x128xf32>
    %305 = arith.mulf %294, %290 : vector<1x128xf32>
    %306 = arith.mulf %296, %300 : vector<1x128xf32>
    %307 = arith.subf %305, %306 : vector<1x128xf32>
    %cst_66 = arith.constant 0.000000e+00 : f32
    %308 = vector.broadcast %cst_66 : f32 to vector<1x128xf32>
    %309 = arith.subf %308, %295 : vector<1x128xf32>
    %310 = arith.mulf %309, %296 : vector<1x128xf32>
    %311 = arith.mulf %307, %307 : vector<1x128xf32>
    %cst_67 = arith.constant 4.000000e+00 : f32
    %312 = vector.broadcast %cst_67 : f32 to vector<1x128xf32>
    %313 = arith.mulf %312, %304 : vector<1x128xf32>
    %314 = arith.mulf %313, %310 : vector<1x128xf32>
    %315 = arith.subf %311, %314 : vector<1x128xf32>
    %cst_68 = arith.constant 0.000000e+00 : f32
    %316 = vector.broadcast %cst_68 : f32 to vector<1x128xf32>
    %317 = arith.maximumf %315, %316 : vector<1x128xf32>
    %cst_69 = arith.constant 2.000000e+00 : f32
    %318 = vector.broadcast %cst_69 : f32 to vector<1x128xf32>
    %319 = arith.mulf %318, %310 : vector<1x128xf32>
    %cst_70 = arith.constant 0.000000e+00 : f32
    %320 = vector.broadcast %cst_70 : f32 to vector<1x128xf32>
    %321 = arith.subf %320, %307 : vector<1x128xf32>
    %322 = math.sqrt %317 : vector<1x128xf32>
    %323 = arith.subf %321, %322 : vector<1x128xf32>
    %324 = arith.divf %319, %323 : vector<1x128xf32>
    %325 = arith.mulf %324, %293 : vector<1x128xf32>
    %326 = arith.addf %325, %285 : vector<1x128xf32>
    %cst_71 = arith.constant -5.000000e+00 : f32
    %327 = vector.broadcast %cst_71 : f32 to vector<1x128xf32>
    %328 = arith.cmpf oge, %0, %327 : vector<1x128xf32>
    %cst_72 = arith.constant 5.000000e+00 : f32
    %329 = vector.broadcast %cst_72 : f32 to vector<1x128xf32>
    %330 = arith.cmpf ole, %0, %329 : vector<1x128xf32>
    %331 = arith.andi %328, %330 : vector<1x128xi1>
    %332 = arith.select %331, %326, %0 : vector<1x128xi1>, vector<1x128xf32>
    %c0_73 = arith.constant 0 : index
    %c0_74 = arith.constant 0 : index
    %333 = vector.load %arg5[%c0_73, %c0_74] : memref<1x128xf32, #tpu.memory_space<vmem>>, vector<1x128xf32>
    tpu.vector_store %arg5[%c0_73, %c0_74], %332 {strides = array<i32>} : memref<1x128xf32, #tpu.memory_space<vmem>>, vector<1x128xf32>,
    return
  }
  func.func @transform_0(%arg0: i32) -> (i32, i32) {
    %c0_i32 = arith.constant 0 : i32
    %c0_i32_0 = arith.constant 0 : i32
    return %c0_i32, %arg0 : i32, i32
  }
  func.func @transform_1(%arg0: i32) -> (i32, i32) {
    %c0_i32 = arith.constant 0 : i32
    %c0_i32_0 = arith.constant 0 : i32
    return %c0_i32, %arg0 : i32, i32
  }
  func.func @transform_2(%arg0: i32) -> (i32, i32) {
    %c0_i32 = arith.constant 0 : i32
    %c0_i32_0 = arith.constant 0 : i32
    return %c0_i32, %arg0 : i32, i32
  }
  func.func @transform_3(%arg0: i32) -> (i32, i32) {
    %c0_i32 = arith.constant 0 : i32
    %c0_i32_0 = arith.constant 0 : i32
    return %c0_i32, %arg0 : i32, i32
  }
  func.func @transform_4(%arg0: i32) -> (i32, i32) {
    %c0_i32 = arith.constant 0 : i32
    %c0_i32_0 = arith.constant 0 : i32
    return %c0_i32, %arg0 : i32, i32
  }
}

</mosaic_0001>

<llo_original>
// kernel: tpu_custom_call.1
$region0: #{tpu_custom_call.1}
  #allocation0 [shape = 'u32[]', space=smem, size = 0x4, offset = 0x4, fixed_abs, tag = 'smem constant byte address 0x4 - core index']
  #allocation1 [shape = 'u32[72,128]{1,0:T(1,128)}', space=vmem, size = 0x9000, scoped, tag = 'internal scratch']
  %s0 = inlined_call_operand.hbm [shape: f32[1,128], index: 0, kind: input, shape index: {}]
  %s1 = inlined_call_operand.hbm [shape: f32[10,128], index: 1, kind: input, shape index: {}]
  %s2 = inlined_call_operand.hbm [shape: f32[10,128], index: 2, kind: input, shape index: {}]
  %s3 = inlined_call_operand.hbm [shape: f32[11,128], index: 3, kind: input, shape index: {}]
  %s4 = inlined_call_operand.hbm [shape: f32[1,128], index: 4, kind: output, shape index: {}]
  %s5 = sld [smem:[#allocation0]]
  $region42: #{tpu_custom_call.1} parent=0
    _
  %s7 = ssub.s32 1, %s5
  %s8 = scalar_select 0, %s7, %s5
  $region1: #{tpu_custom_call.1} parent=0
    #allocation2 [shape = 'u8[512]{0}', space=vmem, size = 0x400, scoped, tag = 'input window, operand 0, single buffered']
    #allocation3 [shape = 's32[1]{0}', space=sflag, size = 0x4, scoped, tag = 'scoped memory for tpu_custom_call.1']
    #allocation4 [shape = 's32[1]{0}', space=sflag, size = 0x4, scoped, tag = 'scoped memory for tpu_custom_call.1']
    #allocation5 [shape = 'u8[8192]{0}', space=vmem, size = 0x2000, scoped, tag = 'input window, operand 1, single buffered']
    #allocation6 [shape = 's32[1]{0}', space=sflag, size = 0x4, scoped, tag = 'scoped memory for tpu_custom_call.1']
    #allocation7 [shape = 'u8[8192]{0}', space=vmem, size = 0x2000, scoped, tag = 'input window, operand 2, single buffered']
    #allocation8 [shape = 'u8[8192]{0}', space=vmem, size = 0x2000, scoped, tag = 'input window, operand 3, single buffered']
    #allocation9 [shape = 's32[1]{0}', space=sflag, size = 0x4, scoped, tag = 'scoped memory for tpu_custom_call.1']
    #allocation10 [shape = 'u8[512]{0}', space=vmem, size = 0x400, scoped, tag = 'output window, operand 0, single buffered']
    %9 = vsyncpa [#allocation3], 0
    %10 = vsyncpa [#allocation6], 0
    %11 = vsyncpa [#allocation9], 0
    %12 = vsyncpa [#allocation4], 0
    // Predicated region
    $region2: #{tpu_custom_call.1} parent=1 // pred_check
      _
    $region3: #{tpu_custom_call.1} parent=1 // pred_check_branch
      %14 = sbr.rel (0) target = $region5
    $region4: #{tpu_custom_call.1} parent=1 // pred_region
      %16 = vsyncadd [#allocation3], 0
      %s18 = sshll.u32 %s0, 4
      %s19 = int_to_ptr.hbm [resolvable:$true] %s18
      %s20 = sshll.u32 [#allocation2], 4
      %s21 = int_to_ptr.vmem [resolvable:$true] %s20
      %23 = dma.hbm_to_vmem [thread:$0]  %s19, 16, %s21, [#allocation3]
    $region5: #{tpu_custom_call.1} parent=1 // pred_fallthru
      _
    // Predicated region
    $region6: #{tpu_custom_call.1} parent=1 // pred_check
      _
    $region7: #{tpu_custom_call.1} parent=1 // pred_check_branch
      %25 = sbr.rel (0) target = $region9
    $region8: #{tpu_custom_call.1} parent=1 // pred_region
      %27 = vsyncadd [#allocation6], 0
      %s28 = sshll.u32 %s1, 4
      %s29 = int_to_ptr.hbm [resolvable:$true] %s28
      %s30 = sshll.u32 [#allocation5], 4
      %s31 = int_to_ptr.vmem [resolvable:$true] %s30
      %36 = dma.hbm_to_vmem [thread:$0]  %s29, 256, %s31, [#allocation6], 128, 128, 8
    $region9: #{tpu_custom_call.1} parent=1 // pred_fallthru
      _
    // Predicated region
    $region10: #{tpu_custom_call.1} parent=1 // pred_check
      _
    $region11: #{tpu_custom_call.1} parent=1 // pred_check_branch
      %38 = sbr.rel (0) target = $region13
    $region12: #{tpu_custom_call.1} parent=1 // pred_region
      %40 = vsyncadd [#allocation6], 0
      %s41 = sshll.u32 %s2, 4
      %s42 = int_to_ptr.hbm [resolvable:$true] %s41
      %s43 = sshll.u32 [#allocation7], 4
      %s44 = int_to_ptr.vmem [resolvable:$true] %s43
      %49 = dma.hbm_to_vmem [thread:$0]  %s42, 256, %s44, [#allocation6], 128, 128, 8
    $region13: #{tpu_custom_call.1} parent=1 // pred_fallthru
      _
    // Predicated region
    $region14: #{tpu_custom_call.1} parent=1 // pred_check
      _
    $region15: #{tpu_custom_call.1} parent=1 // pred_check_branch
      %51 = sbr.rel (0) target = $region17
    $region16: #{tpu_custom_call.1} parent=1 // pred_region
      %53 = vsyncadd [#allocation9], 0
      %s54 = sshll.u32 %s3, 4
      %s55 = int_to_ptr.hbm [resolvable:$true] %s54
      %s56 = sshll.u32 [#allocation8], 4
      %s57 = int_to_ptr.vmem [resolvable:$true] %s56
      %62 = dma.hbm_to_vmem [thread:$0]  %s55, 256, %s57, [#allocation9], 128, 128, 8
    $region17: #{tpu_custom_call.1} parent=1 // pred_fallthru
      _
    // Predicated region
    $region18: #{tpu_custom_call.1} parent=1 // pred_check
      _
    $region19: #{tpu_custom_call.1} parent=1 // pred_check_branch
      %64 = sbr.rel (0) target = $region21
    $region20: #{tpu_custom_call.1} parent=1 // pred_region
      %66 = dma.done [#allocation3], 16
    $region21: #{tpu_custom_call.1} parent=1 // pred_fallthru
      _
    // Predicated region
    $region22: #{tpu_custom_call.1} parent=1 // pred_check
      _
    $region23: #{tpu_custom_call.1} parent=1 // pred_check_branch
      %68 = sbr.rel (0) target = $region25
    $region24: #{tpu_custom_call.1} parent=1 // pred_region
      %70 = dma.done [#allocation6], 256
    $region25: #{tpu_custom_call.1} parent=1 // pred_fallthru
      _
    // Predicated region
    $region26: #{tpu_custom_call.1} parent=1 // pred_check
      _
    $region27: #{tpu_custom_call.1} parent=1 // pred_check_branch
      %72 = sbr.rel (0) target = $region29
    $region28: #{tpu_custom_call.1} parent=1 // pred_region
      %74 = dma.done [#allocation6], 256
    $region29: #{tpu_custom_call.1} parent=1 // pred_fallthru
      _
    // Predicated region
    $region30: #{tpu_custom_call.1} parent=1 // pred_check
      _
    $region31: #{tpu_custom_call.1} parent=1 // pred_check_branch
      %76 = sbr.rel (0) target = $region33
    $region32: #{tpu_custom_call.1} parent=1 // pred_region
      %78 = dma.done [#allocation9], 256
    $region33: #{tpu_custom_call.1} parent=1 // pred_fallthru
      _
    %v79 = vld [vmem:[#allocation2] sm:$0x1]
    %v80 = vld [vmem:[#allocation5] sm:$0xff]
    %v81 = vld [vmem:[#allocation5 + $0x8] sm:$0x3]
    %v82 = vld [vmem:[#allocation7] sm:$0xff]
    %v83 = vld [vmem:[#allocation7 + $0x8] sm:$0x3]
    %v84 = vld [vmem:[#allocation8] sm:$0xff]
    %v85 = vld [vmem:[#allocation8 + $0x8] sm:$0x7]
    %vm86 = vcmask 1041408
    %v87 = vsel %vm86, %v81, -inf
    %v88 = vmax.f32 %v80, %v87
    %v89 = vrot.slane %v88, 4
    %v90 = vmax.f32 %v88, %v89
    %v91 = vrot.slane %v90, 2
    %v92 = vmax.f32 %v90, %v91
    %v93 = vrot.slane %v92, 1
    %v94 = vmax.f32 %v92, %v93
    %v95 = vsub.f32 %v80, %v94
    %v96 = vsub.f32 %v81, %v94
    %v97 = vmul.f32 %v95, 1.442695
    %v98 = vpow.pop %v97
    %v99 = vmul.f32 %v96, 1.442695
    %v100 = vpow.pop %v99
    %v101 = vsel %vm86, %v100, 0.0
    %v102 = vadd.f32 %v98, %v101
    %v103 = vrot.slane %v102, 4
    %v104 = vadd.f32 %v102, %v103
    %v105 = vrot.slane %v104, 2
    %v106 = vadd.f32 %v104, %v105
    %v107 = vrot.slane %v106, 1
    %v108 = vadd.f32 %v106, %v107
    %v109 = vrcp.pop %v108
    %v110 = vmul.f32 %v108, %v109
    %v111 = vsub.f32 1.0, %v110
    %v112 = vmul.f32 %v109, %v111
    %v113 = vadd.f32 %v109, %v112
    %vm114 = vweird.f32 %v108
    %vm115 = vweird.f32 %v109
    %vm116 = vmor %vm114, %vm115
    %v117 = vsel %vm116, %v109, %v113
    %v118 = vand.u32 2147483647, %v108
    %vm119 = vcmp.eq.f32.partialorder %v118, 8.507059e+37
    %v120 = vand.u32 %v108, 2147483648
    %v121 = vor.u32 1.1754944e-38, %v120
    %v122 = vsel %vm119, %v121, %v117
    %v123 = vmul.f32 1.0, %v122
    %v124 = vmul.f32 %v98, %v123
    %v125 = vmul.f32 %v100, %v123
    %v126 = vmul.f32 %v124, 0.99
    %v127 = vmul.f32 %v125, 0.99
    %v128 = vadd.f32 %v126, 0.001
    %v129 = vadd.f32 %v127, 0.001
    %v130 = vsel %vm86, %v83, -inf
    %v131 = vmax.f32 %v82, %v130
    %v132 = vrot.slane %v131, 4
    %v133 = vmax.f32 %v131, %v132
    %v134 = vrot.slane %v133, 2
    %v135 = vmax.f32 %v133, %v134
    %v136 = vrot.slane %v135, 1
    %v137 = vmax.f32 %v135, %v136
    %v138 = vsub.f32 %v82, %v137
    %v139 = vsub.f32 %v83, %v137
    %v140 = vmul.f32 %v138, 1.442695
    %v141 = vpow.pop %v140
    %v142 = vmul.f32 %v139, 1.442695
    %v143 = vpow.pop %v142
    %v144 = vsel %vm86, %v143, 0.0
    %v145 = vadd.f32 %v141, %v144
    %v146 = vrot.slane %v145, 4
    %v147 = vadd.f32 %v145, %v146
    %v148 = vrot.slane %v147, 2
    %v149 = vadd.f32 %v147, %v148
    %v150 = vrot.slane %v149, 1
    %v151 = vadd.f32 %v149, %v150
    %v152 = vrcp.pop %v151
    %v153 = vmul.f32 %v151, %v152
    %v154 = vsub.f32 1.0, %v153
    %v155 = vmul.f32 %v152, %v154
    %v156 = vadd.f32 %v152, %v155
    %vm157 = vweird.f32 %v151
    %vm158 = vweird.f32 %v152
    %vm159 = vmor %vm157, %vm158
    %v160 = vsel %vm159, %v152, %v156
    %v161 = vand.u32 2147483647, %v151
    %vm162 = vcmp.eq.f32.partialorder %v161, 8.507059e+37
    %v163 = vand.u32 %v151, 2147483648
    %v164 = vor.u32 1.1754944e-38, %v163
    %v165 = vsel %vm162, %v164, %v160
    %v166 = vmul.f32 1.0, %v165
    %v167 = vmul.f32 %v141, %v166
    %v168 = vmul.f32 %v143, %v166
    %v169 = vmul.f32 %v167, 0.99
    %v170 = vmul.f32 %v168, 0.99
    %v171 = vadd.f32 %v169, 0.001
    %v172 = vadd.f32 %v170, 0.001
    %v173 = vmax.f32 %v84, 0.0
    %v174 = vmax.f32 %v85, 0.0
    %v175 = vadd.f32 %v173, 0.001
    %v176 = vadd.f32 %v174, 0.001
    %v177 = vand.u32 2147483647, %v84
    %v178 = vand.u32 2147483647, %v85
    %v179 = vsub.f32 0.0, %v177
    %v180 = vsub.f32 0.0, %v178
    %v181 = vmul.f32 %v179, 1.442695
    %v182 = vpow.pop %v181
    %v183 = vmul.f32 %v180, 1.442695
    %v184 = vpow.pop %v183
    %v185 = vadd.f32 %v182, 1.0
    %v186 = vadd.f32 %v184, 1.0
    %v187 = vlog2.pop %v185
    %v188 = vmul.f32 %v187, 0.6931472
    %v189 = vlog2.pop %v186
    %v190 = vmul.f32 %v189, 0.6931472
    %v191 = vadd.f32 %v175, %v188
    %v192 = vadd.f32 %v176, %v190
    %v193 = vadd.f32 %v128, 0.0
    %v194 = vadd.f32 %v171, 0.0
    %v195 = vmul.f32 %v193, 10.0
    %v196 = vadd.f32 %v195, -5.0
    %v197 = vmul.f32 %v194, 10.0
    %v198 = vadd.f32 %v197, -5.0
    %v200 = vrot.slane %v128, 1
    %v202 = vadd.f32 %v193, %v200
    %v204 = vrot.slane %v171, 1
    %v206 = vadd.f32 %v194, %v204
    %v207 = vmul.f32 %v202, 10.0
    %v208 = vadd.f32 %v207, -5.0
    %v209 = vmul.f32 %v206, 10.0
    %v210 = vadd.f32 %v209, -5.0
    %v211 = vrot.slane %v128, 2
    %v213 = vadd.f32 %v202, %v211
    %v214 = vrot.slane %v171, 2
    %v216 = vadd.f32 %v206, %v214
    %v217 = vmul.f32 %v213, 10.0
    %v218 = vadd.f32 %v217, -5.0
    %v219 = vmul.f32 %v216, 10.0
    %v220 = vadd.f32 %v219, -5.0
    %v221 = vrot.slane %v128, 3
    %v223 = vadd.f32 %v213, %v221
    %v224 = vrot.slane %v171, 3
    %v226 = vadd.f32 %v216, %v224
    %v227 = vmul.f32 %v223, 10.0
    %v228 = vadd.f32 %v227, -5.0
    %v229 = vmul.f32 %v226, 10.0
    %v230 = vadd.f32 %v229, -5.0
    %v231 = vrot.slane %v128, 4
    %v233 = vadd.f32 %v223, %v231
    %v234 = vrot.slane %v171, 4
    %v236 = vadd.f32 %v226, %v234
    %v237 = vmul.f32 %v233, 10.0
    %v238 = vadd.f32 %v237, -5.0
    %v239 = vmul.f32 %v236, 10.0
    %v240 = vadd.f32 %v239, -5.0
    %v241 = vrot.slane %v128, 5
    %v243 = vadd.f32 %v233, %v241
    %v244 = vrot.slane %v171, 5
    %v246 = vadd.f32 %v236, %v244
    %v247 = vmul.f32 %v243, 10.0
    %v248 = vadd.f32 %v247, -5.0
    %v249 = vmul.f32 %v246, 10.0
    %v250 = vadd.f32 %v249, -5.0
    %v251 = vrot.slane %v128, 6
    %v253 = vadd.f32 %v243, %v251
    %v254 = vrot.slane %v171, 6
    %v256 = vadd.f32 %v246, %v254
    %v257 = vmul.f32 %v253, 10.0
    %v258 = vadd.f32 %v257, -5.0
    %v259 = vmul.f32 %v256, 10.0
    %v260 = vadd.f32 %v259, -5.0
    %v261 = vrot.slane %v128, 7
    %v263 = vadd.f32 %v253, %v261
    %v264 = vrot.slane %v171, 7
    %v266 = vadd.f32 %v256, %v264
    %v267 = vmul.f32 %v263, 10.0
    %v268 = vadd.f32 %v267, -5.0
    %v269 = vmul.f32 %v266, 10.0
    %v270 = vadd.f32 %v269, -5.0
    %v271 = vadd.f32 %v263, %v129
    %v272 = vadd.f32 %v266, %v172
    %v273 = vmul.f32 %v271, 10.0
    %v274 = vadd.f32 %v273, -5.0
    %v275 = vmul.f32 %v272, 10.0
    %v276 = vadd.f32 %v275, -5.0
    %vm277 = vcmp.ge.f32.partialorder %v79, 5.000001
    %v278 = vsel %vm277, 1, 0
    %vm279 = vcmp.ge.f32.partialorder %v79, %v198
    %v280 = vsel %vm279, 1, 0
    %v281 = vadd.s32 %v278, %v280
    %vm282 = vcmp.ge.f32.partialorder %v79, %v210
    %v283 = vsel %vm282, 1, 0
    %v284 = vadd.s32 %v281, %v283
    %vm285 = vcmp.ge.f32.partialorder %v79, %v220
    %v286 = vsel %vm285, 1, 0
    %v287 = vadd.s32 %v284, %v286
    %vm288 = vcmp.ge.f32.partialorder %v79, %v230
    %v289 = vsel %vm288, 1, 0
    %v290 = vadd.s32 %v287, %v289
    %vm291 = vcmp.ge.f32.partialorder %v79, %v240
    %v292 = vsel %vm291, 1, 0
    %v293 = vadd.s32 %v290, %v292
    %vm294 = vcmp.ge.f32.partialorder %v79, %v250
    %v295 = vsel %vm294, 1, 0
    %v296 = vadd.s32 %v293, %v295
    %vm297 = vcmp.ge.f32.partialorder %v79, %v260
    %v298 = vsel %vm297, 1, 0
    %v299 = vadd.s32 %v296, %v298
    %vm300 = vcmp.ge.f32.partialorder %v79, %v270
    %v301 = vsel %vm300, 1, 0
    %v302 = vadd.s32 %v299, %v301
    %vm303 = vcmp.ge.f32.partialorder %v79, %v276
    %v304 = vsel %vm303, 1, 0
    %v305 = vadd.s32 %v302, %v304
    %vm306 = vcmp.lt.s32.totalorder %v305, 9
    %v307 = vsel %vm306, %v305, 9
    %vm308 = vcmp.eq.s32.totalorder %v307, 0
    %v309 = vsel %vm308, -5.0, 0.0
    %v310 = vsel %vm308, %v196, 0.0
    %v311 = vsel %vm308, %v198, 0.0
    %v312 = vsel %vm308, %v191, 0.0
    %314 = vst [vmem:[#allocation1] sm:$0xff] %v191
    %s315 = scalar_lea.vmem [#allocation1], 1
    %v316 = vld [vmem:[%s315] ss:$9 sm:$0xff]
    %v318 = vsel %vm308, %v316, 0.0
    %vm319 = vcmp.eq.s32.totalorder %v307, 1
    %v320 = vsel %vm319, %v196, %v309
    %v321 = vsel %vm319, %v208, %v310
    %v322 = vsel %vm319, %v198, %v309
    %v323 = vsel %vm319, %v210, %v311
    %324 = vst [vmem:[#allocation1] sm:$0xff] %v191
    %s325 = scalar_lea.vmem [#allocation1], 1
    %v326 = vld [vmem:[%s325] ss:$9 sm:$0xff]
    %v328 = vsel %vm319, %v326, %v312
    %329 = vst [vmem:[#allocation1] sm:$0xff] %v191
    %s330 = scalar_lea.vmem [#allocation1], 2
    %v331 = vld [vmem:[%s330] ss:$9 sm:$0xff]
    %v333 = vsel %vm319, %v331, %v318
    %vm334 = vcmp.eq.s32.totalorder %v307, 2
    %v335 = vsel %vm334, %v208, %v320
    %v336 = vsel %vm334, %v218, %v321
    %v337 = vsel %vm334, %v210, %v322
    %v338 = vsel %vm334, %v220, %v323
    %339 = vst [vmem:[#allocation1] sm:$0xff] %v191
    %s340 = scalar_lea.vmem [#allocation1], 2
    %v341 = vld [vmem:[%s340] ss:$9 sm:$0xff]
    %v343 = vsel %vm334, %v341, %v328
    %344 = vst [vmem:[#allocation1] sm:$0xff] %v191
    %s345 = scalar_lea.vmem [#allocation1], 3
    %v346 = vld [vmem:[%s345] ss:$9 sm:$0xff]
    %v348 = vsel %vm334, %v346, %v333
    %vm349 = vcmp.eq.s32.totalorder %v307, 3
    %v350 = vsel %vm349, %v218, %v335
    %v351 = vsel %vm349, %v228, %v336
    %v352 = vsel %vm349, %v220, %v337
    %v353 = vsel %vm349, %v230, %v338
    %354 = vst [vmem:[#allocation1] sm:$0xff] %v191
    %s355 = scalar_lea.vmem [#allocation1], 3
    %v356 = vld [vmem:[%s355] ss:$9 sm:$0xff]
    %v358 = vsel %vm349, %v356, %v343
    %359 = vst [vmem:[#allocation1] sm:$0xff] %v191
    %s360 = scalar_lea.vmem [#allocation1], 4
    %v361 = vld [vmem:[%s360] ss:$9 sm:$0xff]
    %v363 = vsel %vm349, %v361, %v348
    %vm364 = vcmp.eq.s32.totalorder %v307, 4
    %v365 = vsel %vm364, %v228, %v350
    %v366 = vsel %vm364, %v238, %v351
    %v367 = vsel %vm364, %v230, %v352
    %v368 = vsel %vm364, %v240, %v353
    %369 = vst [vmem:[#allocation1] sm:$0xff] %v191
    %s370 = scalar_lea.vmem [#allocation1], 4
    %v371 = vld [vmem:[%s370] ss:$9 sm:$0xff]
    %v373 = vsel %vm364, %v371, %v358
    %374 = vst [vmem:[#allocation1] sm:$0xff] %v191
    %s375 = scalar_lea.vmem [#allocation1], 5
    %v376 = vld [vmem:[%s375] ss:$9 sm:$0xff]
    %v378 = vsel %vm364, %v376, %v363
    %vm379 = vcmp.eq.s32.totalorder %v307, 5
    %v380 = vsel %vm379, %v238, %v365
    %v381 = vsel %vm379, %v248, %v366
    %v382 = vsel %vm379, %v240, %v367
    %v383 = vsel %vm379, %v250, %v368
    %384 = vst [vmem:[#allocation1] sm:$0xff] %v191
    %s385 = scalar_lea.vmem [#allocation1], 5
    %v386 = vld [vmem:[%s385] ss:$9 sm:$0xff]
    %v388 = vsel %vm379, %v386, %v373
    %389 = vst [vmem:[#allocation1] sm:$0xff] %v191
    %s390 = scalar_lea.vmem [#allocation1], 6
    %v391 = vld [vmem:[%s390] ss:$9 sm:$0xff]
    %v393 = vsel %vm379, %v391, %v378
    %vm394 = vcmp.eq.s32.totalorder %v307, 6
    %v395 = vsel %vm394, %v248, %v380
    %v396 = vsel %vm394, %v258, %v381
    %v397 = vsel %vm394, %v250, %v382
    %v398 = vsel %vm394, %v260, %v383
    %399 = vst [vmem:[#allocation1] sm:$0xff] %v191
    %s400 = scalar_lea.vmem [#allocation1], 6
    %v401 = vld [vmem:[%s400] ss:$9 sm:$0xff]
    %v403 = vsel %vm394, %v401, %v388
    %404 = vst [vmem:[#allocation1] sm:$0xff] %v191
    %s405 = scalar_lea.vmem [#allocation1], 7
    %v406 = vld [vmem:[%s405] ss:$9 sm:$0xff]
    %v408 = vsel %vm394, %v406, %v393
    %vm409 = vcmp.eq.s32.totalorder %v307, 7
    %v410 = vsel %vm409, %v258, %v395
    %v411 = vsel %vm409, %v268, %v396
    %v412 = vsel %vm409, %v260, %v397
    %v413 = vsel %vm409, %v270, %v398
    %414 = vst [vmem:[#allocation1] sm:$0xff] %v191
    %s415 = scalar_lea.vmem [#allocation1], 7
    %v416 = vld [vmem:[%s415] ss:$9 sm:$0xff]
    %v418 = vsel %vm409, %v416, %v403
    %v419 = vsel %vm409, %v192, %v408
    %vm420 = vcmp.eq.s32.totalorder %v307, 8
    %v421 = vsel %vm420, %v268, %v410
    %v422 = vsel %vm420, %v274, %v411
    %v423 = vsel %vm420, %v270, %v412
    %v424 = vsel %vm420, %v276, %v413
    %v425 = vsel %vm420, %v192, %v418
    %427 = vst [vmem:[#allocation1] sm:$0xff] %v192
    %s428 = scalar_lea.vmem [#allocation1], 1
    %v429 = vld [vmem:[%s428] ss:$9 sm:$0xff]
    %v431 = vsel %vm420, %v429, %v419
    %vm432 = vcmp.eq.s32.totalorder %v307, 9
    %v433 = vsel %vm432, %v274, %v421
    %v434 = vsel %vm432, 5.0, %v422
    %v435 = vsel %vm432, %v276, %v423
    %v436 = vsel %vm432, 5.0, %v424
    %437 = vst [vmem:[#allocation1] sm:$0xff] %v192
    %s438 = scalar_lea.vmem [#allocation1], 1
    %v439 = vld [vmem:[%s438] ss:$9 sm:$0xff]
    %v441 = vsel %vm432, %v439, %v425
    %442 = vst [vmem:[#allocation1] sm:$0xff] %v192
    %s443 = scalar_lea.vmem [#allocation1], 2
    %v444 = vld [vmem:[%s443] ss:$9 sm:$0xff]
    %v446 = vsel %vm432, %v444, %v431
    %v447 = vsub.f32 %v434, %v433
    %v448 = vsub.f32 %v436, %v435
    %v449 = vrcp.pop %v447
    %v450 = vmul.f32 %v447, %v449
    %v451 = vsub.f32 1.0, %v450
    %v452 = vmul.f32 %v449, %v451
    %v453 = vadd.f32 %v449, %v452
    %vm454 = vweird.f32 %v447
    %vm455 = vweird.f32 %v449
    %vm456 = vmor %vm454, %vm455
    %v457 = vsel %vm456, %v449, %v453
    %v458 = vand.u32 2147483647, %v447
    %vm459 = vcmp.eq.f32.partialorder %v458, 8.507059e+37
    %v460 = vand.u32 %v447, 2147483648
    %v461 = vor.u32 1.1754944e-38, %v460
    %v462 = vsel %vm459, %v461, %v457
    %v463 = vmul.f32 %v448, %v462
    %v464 = vsub.f32 %v79, %v435
    %v465 = vadd.f32 %v441, %v446
    %v466 = vmul.f32 %v463, 2.0
    %v467 = vsub.f32 %v465, %v466
    %v468 = vmul.f32 %v464, %v467
    %v469 = vsub.f32 %v463, %v441
    %v470 = vmul.f32 %v448, %v469
    %v471 = vadd.f32 %v468, %v470
    %v472 = vmul.f32 %v448, %v441
    %v473 = vsub.f32 %v472, %v468
    %v474 = vsub.f32 0.0, %v463
    %v475 = vmul.f32 %v474, %v464
    %v476 = vmul.f32 %v473, %v473
    %v477 = vmul.f32 %v471, 4.0
    %v478 = vmul.f32 %v477, %v475
    %v479 = vsub.f32 %v476, %v478
    %v480 = vmax.f32 %v479, 0.0
    %v481 = vmul.f32 %v475, 2.0
    %v482 = vsub.f32 0.0, %v473
    %v483 = vrsqrt.pop %v480
    %v484 = vmul.f32 %v483, %v480
    %v485 = vmul.f32 %v484, %v483
    %v486 = vmul.f32 0.5, %v485
    %v487 = vsub.f32 1.5, %v486
    %v488 = vmul.f32 %v483, %v487
    %v489 = vmul.f32 %v480, %v488
    %vm490 = vcmp.eq.f32.partialorder %v480, inf
    %v491 = vsel %vm490, %v480, %v489
    %vm492 = vcmp.eq.f32.partialorder %v480, 0.0
    %v493 = vand.u32 %v480, 2147483648
    %v494 = vsel %vm492, %v493, %v491
    %v495 = vsub.f32 %v482, %v494
    %v496 = vrcp.pop %v495
    %v497 = vmul.f32 %v495, %v496
    %v498 = vsub.f32 1.0, %v497
    %v499 = vmul.f32 %v496, %v498
    %v500 = vadd.f32 %v496, %v499
    %vm501 = vweird.f32 %v495
    %vm502 = vweird.f32 %v496
    %vm503 = vmor %vm501, %vm502
    %v504 = vsel %vm503, %v496, %v500
    %v505 = vand.u32 2147483647, %v495
    %vm506 = vcmp.eq.f32.partialorder %v505, 8.507059e+37
    %v507 = vand.u32 %v495, 2147483648
    %v508 = vor.u32 1.1754944e-38, %v507
    %v509 = vsel %vm506, %v508, %v504
    %v510 = vmul.f32 %v481, %v509
    %v511 = vmul.f32 %v510, %v447
    %v512 = vadd.f32 %v511, %v433
    %vm513 = vcmp.ge.f32.partialorder %v79, -5.0
    %vm514 = vcmp.le.f32.partialorder %v79, 5.0
    %vm515 = vmand %vm513, %vm514
    %v516 = vsel %vm515, %v512, %v79
    %517 = vst [vmem:[#allocation10] sm:$0x1] %v516
    // Predicated region
    $region34: #{tpu_custom_call.1} parent=1 // pred_check
      _
    $region35: #{tpu_custom_call.1} parent=1 // pred_check_branch
      %519 = sbr.rel (0) target = $region37
    $region36: #{tpu_custom_call.1} parent=1 // pred_region
      %521 = vsyncadd [#allocation4], 0
      %s523 = sshll.u32 [#allocation10], 4
      %s524 = int_to_ptr.vmem [resolvable:$true] %s523
      %s525 = sshll.u32 %s4, 4
      %s526 = int_to_ptr.hbm [resolvable:$true] %s525
      %528 = dma.vmem_to_hbm [thread:$0]  %s524, 16, %s526, [#allocation4]
    $region37: #{tpu_custom_call.1} parent=1 // pred_fallthru
      _
    // Predicated region
    $region38: #{tpu_custom_call.1} parent=1 // pred_check
      _
    $region39: #{tpu_custom_call.1} parent=1 // pred_check_branch
      %530 = sbr.rel (0) target = $region41
    $region40: #{tpu_custom_call.1} parent=1 // pred_region
      %532 = dma.done [#allocation4], 16
    $region41: #{tpu_custom_call.1} parent=1 // pred_fallthru
      _
    %533 = vsyncpa [#allocation3], 1
    %534 = vsyncpa [#allocation6], 1
    %535 = vsyncpa [#allocation9], 1
    %536 = vsyncpa [#allocation4], 1

</llo_original>
